<compile_context>
chip_gen: v7x
topology: tpu7x:2x2x1
jax: 0.10.0
libtpu: 0.0.40
codegen_flags: <defaults>
</compile_context>

<pallas_src>
import math

import jax
import jax.numpy as jnp
from jax.experimental import pallas as pl
from jax.experimental.pallas import tpu as pltpu


def _pe_add_kernel(x_ref, o_ref):
    # block shape: (B, ts, D)
    _, ts, d = x_ref.shape

    # positions of this seq tile, as a (ts, 1) column
    pos = (pl.program_id(0) * ts
           + jax.lax.broadcasted_iota(jnp.int32, (ts, 1), 0)).astype(jnp.float32)

    # per-column quantities on a (1, D) row — D exps per grid step, not ts*D
    col = jax.lax.broadcasted_iota(jnp.int32, (1, d), 1)
    k = ((col >> 1) << 1).astype(jnp.float32)                  # 2 * (col // 2)
    inv_freq = jnp.exp(k * jnp.float32(-math.log(10000.0) / d))
    phase = (col & 1).astype(jnp.float32) * jnp.float32(math.pi / 2.0)

    # cos(x) == sin(x + pi/2): single transcendental per element
    pe = jnp.sin(pos * inv_freq + phase)                       # (ts, D)

    # broadcast PE over the batch dim of the block
    o_ref[...] = x_ref[...] + pe[None].astype(x_ref.dtype)


def _pick_seq_tile(B, S, D, itemsize, target_block_bytes):
    """Largest multiple-of-8 divisor of S whose (B, tile, D) block fits the target."""
    bytes_per_row = max(1, B * D * itemsize)
    max_rows = max(1, target_block_bytes // bytes_per_row)
    best_fit = None      # largest multiple-of-8 divisor of S within the budget
    smallest = None      # smallest multiple-of-8 divisor of S (fallback)
    t = 8
    while t <= S:
        if S % t == 0:
            if smallest is None:
                smallest = t
            if t <= max_rows:
                best_fit = t
        t += 8
    if best_fit is not None:
        return best_fit
    if smallest is not None:
        return smallest
    return S  # no multiple-of-8 divisor (short sequences): one full-S block


def positional_encoding_add(x, seq_tile=None, *, target_block_bytes=4 << 20,
                            donate=False):
    """x: (B, S, D).  Returns x + sinusoidal positional encoding."""
    B, S, D = x.shape
    if D % 2 != 0:
        raise ValueError("d_model must be even (PyTorch buffer layout assumes it)")

    itemsize = jnp.dtype(x.dtype).itemsize
    if seq_tile is None:
        seq_tile = _pick_seq_tile(B, S, D, itemsize, target_block_bytes)
    if S % seq_tile != 0 or (seq_tile % 8 != 0 and seq_tile != S):
        raise ValueError(
            f"seq_tile={seq_tile} must divide S={S} and be a multiple of 8 (or == S)")

    grid = (S // seq_tile,)
    spec = pl.BlockSpec((B, seq_tile, D), lambda s: (0, s, 0))

    return pl.pallas_call(
        _pe_add_kernel,
        out_shape=jax.ShapeDtypeStruct((B, S, D), x.dtype),
        grid_spec=pltpu.PrefetchScalarGridSpec(
            num_scalar_prefetch=0,
            grid=grid,
            in_specs=[spec],
            out_specs=spec,
        ),
        compiler_params=pltpu.CompilerParams(
            dimension_semantics=("parallel",),
            vmem_limit_bytes=48 << 20,
        ),
        input_output_aliases=({0: 0} if donate else {}),
    )(x)


def _reference(x):
    """Pure-JAX reference mirroring the PyTorch buffer construction."""
    B, S, D = x.shape
    position = jnp.arange(S, dtype=jnp.float32)[:, None]
    div_term = jnp.exp(jnp.arange(0, D, 2, dtype=jnp.float32)
                       * -(math.log(10000.0) / D))
    pe = jnp.zeros((S, D), dtype=jnp.float32)
    pe = pe.at[:, 0::2].set(jnp.sin(position * div_term))
    pe = pe.at[:, 1::2].set(jnp.cos(position * div_term))
    return x + pe[None].astype(x.dtype)


if __name__ == "__main__":
    key = jax.random.PRNGKey(0)
    B, S, D = 2, 8, 32  # batch=2, seq=8, d_model=32 (even, as the module assumes)
    x = jax.random.normal(key, (B, S, D), dtype=jnp.float32)

    out = positional_encoding_add(x)
    out = jax.block_until_ready(out)

    ref = _reference(x)
    assert out.shape == (B, S, D)
    assert jnp.allclose(out, ref, atol=1e-5, rtol=1e-5), "mismatch vs reference"

    print("KERNEL_OK")
</pallas_src>

<mosaic_0001>
module attributes {stable_mosaic.version = 11 : i64} {
  func.func @_pe_add_kernel(%arg0: i32, %arg1: memref<2x8x32xf32, #tpu.memory_space<vmem>>, %arg2: memref<2x8x32xf32, #tpu.memory_space<vmem>>) attributes {dimension_semantics = [#tpu.dimension_semantics<parallel>], iteration_bounds = array<i64: 1>, scalar_prefetch = 0 : i64, scratch_operands = 0 : i64, tpu.core_type = #tpu.core_type<tc>, window_params = [{transform_indices = @transform_0, window_bounds = array<i64: 2, 8, 32>}, {transform_indices = @transform_1, window_bounds = array<i64: 2, 8, 32>}]} {
    %c8_i32 = arith.constant 8 : i32
    %0 = arith.muli %arg0, %c8_i32 : i32
    %1 = tpu.iota {dimensions = array<i32: 0>} : vector<8x1xi32>
    %2 = vector.broadcast %0 : i32 to vector<8x1xi32>
    %3 = arith.addi %2, %1 : vector<8x1xi32>
    %4 = arith.sitofp %3 : vector<8x1xi32> to vector<8x1xf32>
    %5 = tpu.iota {dimensions = array<i32: 1>} : vector<1x32xi32>
    %c1_i32 = arith.constant 1 : i32
    %6 = vector.broadcast %c1_i32 : i32 to vector<1x32xi32>
    %7 = arith.shrsi %5, %6 : vector<1x32xi32>
    %c1_i32_0 = arith.constant 1 : i32
    %8 = vector.broadcast %c1_i32_0 : i32 to vector<1x32xi32>
    %9 = arith.shli %7, %8 : vector<1x32xi32>
    %10 = arith.sitofp %9 : vector<1x32xi32> to vector<1x32xf32>
    %cst = arith.constant -0.287823141 : f32
    %11 = vector.broadcast %cst : f32 to vector<1x32xf32>
    %12 = arith.mulf %10, %11 : vector<1x32xf32>
    %13 = math.exp %12 : vector<1x32xf32>
    %c1_i32_1 = arith.constant 1 : i32
    %14 = vector.broadcast %c1_i32_1 : i32 to vector<1x32xi32>
    %15 = arith.andi %5, %14 : vector<1x32xi32>
    %16 = arith.sitofp %15 : vector<1x32xi32> to vector<1x32xf32>
    %cst_2 = arith.constant 1.57079637 : f32
    %17 = vector.broadcast %cst_2 : f32 to vector<1x32xf32>
    %18 = arith.mulf %16, %17 : vector<1x32xf32>
    %19 = vector.broadcast %4 : vector<8x1xf32> to vector<8x32xf32>
    %20 = vector.broadcast %13 : vector<1x32xf32> to vector<8x32xf32>
    %21 = arith.mulf %19, %20 : vector<8x32xf32>
    %22 = vector.broadcast %18 : vector<1x32xf32> to vector<8x32xf32>
    %23 = arith.addf %21, %22 : vector<8x32xf32>
    %24 = math.sin %23 : vector<8x32xf32>
    %c0 = arith.constant 0 : index
    %c0_3 = arith.constant 0 : index
    %c0_4 = arith.constant 0 : index
    %25 = vector.load %arg1[%c0, %c0_3, %c0_4] : memref<2x8x32xf32, #tpu.memory_space<vmem>>, vector<2x8x32xf32>
    %26 = vector.shape_cast %24 : vector<8x32xf32> to vector<1x8x32xf32>
    %27 = vector.broadcast %26 : vector<1x8x32xf32> to vector<2x8x32xf32>
    %28 = arith.addf %25, %27 : vector<2x8x32xf32>
    %c0_5 = arith.constant 0 : index
    %c0_6 = arith.constant 0 : index
    %c0_7 = arith.constant 0 : index
    %29 = vector.load %arg2[%c0_5, %c0_6, %c0_7] : memref<2x8x32xf32, #tpu.memory_space<vmem>>, vector<2x8x32xf32>
    tpu.vector_store %arg2[%c0_5, %c0_6, %c0_7], %28 {strides = array<i32>} : memref<2x8x32xf32, #tpu.memory_space<vmem>>, vector<2x8x32xf32>,
    return
  }
  func.func @transform_0(%arg0: i32) -> (i32, i32, i32) {
    %c0_i32 = arith.constant 0 : i32
    %c0_i32_0 = arith.constant 0 : i32
    %c0_i32_1 = arith.constant 0 : i32
    return %c0_i32, %arg0, %c0_i32_0 : i32, i32, i32
  }
  func.func @transform_1(%arg0: i32) -> (i32, i32, i32) {
    %c0_i32 = arith.constant 0 : i32
    %c0_i32_0 = arith.constant 0 : i32
    %c0_i32_1 = arith.constant 0 : i32
    return %c0_i32, %arg0, %c0_i32_0 : i32, i32, i32
  }
}

</mosaic_0001>

<llo_original>
// kernel: tpu_custom_call.1
$region0: #{tpu_custom_call.1}
  #allocation0 [shape = 'u32[]', space=smem, size = 0x4, offset = 0x4, fixed_abs, tag = 'smem constant byte address 0x4 - core index']
  #allocation1 [shape = 'u32[144,128]{1,0:T(1,128)}', space=vmem, size = 0x12000, scoped, tag = 'internal scratch']
  %s0 = inlined_call_operand.hbm [shape: f32[2,8,32], index: 0, kind: input, shape index: {}]
  %s1 = inlined_call_operand.hbm [shape: f32[2,8,32], index: 1, kind: output, shape index: {}]
  %s2 = sld [smem:[#allocation0]]
  $region18: #{tpu_custom_call.1} parent=0
    _
  %s4 = ssub.s32 1, %s2
  %s5 = scalar_select 0, %s4, %s2
  $region1: #{tpu_custom_call.1} parent=0
    #allocation2 [shape = 'u8[8192]{0}', space=vmem, size = 0x2000, scoped, tag = 'input window, operand 0, single buffered']
    #allocation3 [shape = 's32[1]{0}', space=sflag, size = 0x4, scoped, tag = 'scoped memory for tpu_custom_call.1']
    #allocation4 [shape = 's32[1]{0}', space=sflag, size = 0x4, scoped, tag = 'scoped memory for tpu_custom_call.1']
    #allocation5 [shape = 'u8[8192]{0}', space=vmem, size = 0x2000, scoped, tag = 'output window, operand 0, single buffered']
    %6 = vsyncpa [#allocation3], 0
    %7 = vsyncpa [#allocation4], 0
    // Predicated region
    $region2: #{tpu_custom_call.1} parent=1 // pred_check
      _
    $region3: #{tpu_custom_call.1} parent=1 // pred_check_branch
      %9 = sbr.rel (0) target = $region5
    $region4: #{tpu_custom_call.1} parent=1 // pred_region
      %s11 = ssub.s32 256, 256
      %12 = vsyncadd [#allocation3], %s11
      %s13 = sshll.u32 [#allocation2], 4
      %s14 = int_to_ptr.vmem [resolvable:$true] %s13
      %19 = dma.hbm_to_vmem [thread:$0]  %s0, 256, %s14, [#allocation3], 128, 128, 8
    $region5: #{tpu_custom_call.1} parent=1 // pred_fallthru
      _
    // Predicated region
    $region6: #{tpu_custom_call.1} parent=1 // pred_check
      _
    $region7: #{tpu_custom_call.1} parent=1 // pred_check_branch
      %21 = sbr.rel (0) target = $region9
    $region8: #{tpu_custom_call.1} parent=1 // pred_region
      %22 = dma.done [#allocation3], 256
    $region9: #{tpu_custom_call.1} parent=1 // pred_fallthru
      _
    %s23 = smul.u32 0, 8
    %v24 = vlaneseq
    %v25 = vshrl.u32 %v24, 7
    %v26 = vstv %s23
    %v27 = vadd.s32 %v26, %v25
    %v28 = vcvt.s32.f32 %v27
    %v29 = vlaneseq
    %v30 = vand.u32 %v29, 127
    %v31 = vshra.s32 %v30, 1
    %v32 = vshll.u32 %v31, 1
    %v33 = vcvt.s32.f32 %v32
    %v34 = vmul.f32 %v33, -0.28782314
    %v35 = vmul.f32 %v34, 1.442695
    %v36 = vpow.pop %v35
    %v37 = vand.u32 %v30, 1
    %v38 = vcvt.s32.f32 %v37
    %v39 = vmul.f32 %v38, 1.5707964
    %v40 = vmul.f32 %v28, %v36
    %v41 = vadd.f32 %v40, %v39
    %v42 = vand.u32 2147483647, %v41
    %vm43 = vcmp.le.f32.partialorder %v42, 0.7853982
    %vm44 = vcmp.lt.s32.totalorder %v41, 0
    %v45 = vand.u32 %v41, 2139095040
    %v46 = vshrl.u32 %v45, 23
    %v47 = vsub.s32 %v46, 127
    %v48 = vand.u32 2147483647, %v41
    %v49 = vand.u32 %v48, 8388607
    %v50 = vor.u32 %v49, 8388608
    %v51 = vsub.s32 0, %v50
    %v52 = vadd.s32 %v47, 1
    %vm53 = vcmp.gt.s32.totalorder %v52, 0
    %v54 = vsel %vm53, %v52, 0
    %v55 = vshrl.u32 %v54, 5
    %v56 = vand.u32 %v54, 31
    %v57 = vsub.s32 32, %v56
    %v58 = vshrl.u32 683565275, %v57
    %v59 = vshll.u32 683565275, %v56
    %v60 = vshrl.u32 2475754826, %v57
    %v61 = vor.u32 %v59, %v60
    %v62 = vshll.u32 2475754826, %v56
    %v63 = vshrl.u32 2131351028, %v57
    %v64 = vor.u32 %v62, %v63
    %v65 = vshll.u32 2131351028, %v56
    %v66 = vshrl.u32 2102212464, %v57
    %v67 = vor.u32 %v65, %v66
    %v68 = vshll.u32 2102212464, %v56
    %v69 = vshrl.u32 920167782, %v57
    %v70 = vor.u32 %v68, %v69
    %v71 = vshll.u32 920167782, %v56
    %v72 = vshrl.u32 1326507024, %v57
    %v73 = vor.u32 %v71, %v72
    %vm74 = vcmp.lt.s32.totalorder %v55, 1
    %vm75 = vcmp.lt.s32.totalorder %v55, 2
    %vm76 = vcmp.lt.s32.totalorder %v55, 3
    %vm77 = vcmp.lt.s32.totalorder %v55, 4
    %v78 = vsel %vm74, %v58, %v61
    %v79 = vsel %vm77, %v67, 2102212464
    %v80 = vsel %vm76, %v64, %v79
    %v81 = vsel %vm75, %v78, %v80
    %v82 = vsel %vm74, %v61, %v64
    %v83 = vsel %vm77, %v70, 920167782
    %v84 = vsel %vm76, %v67, %v83
    %v85 = vsel %vm75, %v82, %v84
    %v86 = vsel %vm74, %v64, %v67
    %v87 = vsel %vm77, %v73, 1326507024
    %v88 = vsel %vm76, %v70, %v87
    %v89 = vsel %vm75, %v86, %v88
    %v90 = vshll.u32 %v50, 8
    %v91 = vmul.u32.u64.compose %v90, %v89
    %v92 = vextract.low.u32 %v91
    %v93 = vextract.high.u32 %v91
    %v94 = vmul.u32.u64.compose %v90, %v85
    %v95 = vextract.low.u32 %v94
    %v96 = vextract.high.u32 %v94
    %v97 = vmul.u32 %v90, %v81
    %v98 = vadd.s32 %v93, %v95
    %vm99 = vc.u32 %v93, %v95
    %v100 = vadd.s32 %v96, 1
    %v101 = vsel %vm99, %v100, %v96
    %v102 = vadd.s32 %v97, %v101
    %v103 = vadd.s32 %v102, 536870912
    %v104 = vshrl.u32 %v103, 30
    %v105 = vshll.u32 %v104, 30
    %v106 = vsub.s32 %v102, %v105
    %vm107 = vcmp.lt.s32.totalorder %v106, 0
    %v108 = vsub.s32 0, %v106
    %v109 = vsel %vm107, %v108, %v106
    %v110 = vclz %v109
    %v111 = vsub.s32 %v110, 2
    %vm112 = vcmp.gt.s32.totalorder 0, %v111
    %v113 = vsel %vm112, 0, %v111
    %v114 = vsub.s32 32, %v113
    %v115 = vshll.u32 %v106, %v113
    %v116 = vshrl.u32 %v98, %v114
    %v117 = vor.u32 %v115, %v116
    %v118 = vsub.s32 4294967266, %v113
    %v119 = vadd.s32 %v118, 127
    %v120 = vshll.u32 %v119, 23
    %v121 = vor.u32 4788187, %v120
    %v122 = vand.u32 2147483647, %v121
    %v124 = vcvt.s32.f32 %v117
    %v125 = vmul.f32 %v124, %v122
    %v126 = vxor.u32 %v125, 2147483648
    %v127 = vsel %vm44, %v126, %v125
    %v128 = vsub.s32 4, %v104
    %v129 = vsel %vm44, %v128, %v104
    %v130 = vsel %vm43, %v41, %v127
    %v131 = vsel %vm43, 0, %v129
    %v132 = vcosq.f32.pop %v130
    %v133 = vsinq.f32.pop %v130
    %vm134 = vweird.f32 %v41
    %v135 = vadd.s32 %v131, 3
    %v136 = vand.u32 %v135, 3
    %vm137 = vcmp.lt.s32.totalorder %v136, 2
    %vm138 = vcmp.eq.s32.totalorder %v136, 0
    %v139 = vxor.u32 %v133, 2147483648
    %v140 = vsel %vm138, %v132, %v139
    %vm141 = vcmp.eq.s32.totalorder %v136, 2
    %v142 = vxor.u32 %v132, 2147483648
    %v143 = vsel %vm141, %v142, %v133
    %v144 = vsel %vm137, %v140, %v143
    %v145 = vsel %vm134, nan, %v144
    %v146 = vld [vmem:[#allocation2] sm:$0xff]
    %v147 = vld [vmem:[#allocation2 + $0x8] sm:$0xff]
    %v148 = vadd.f32 %v146, %v145
    %v149 = vadd.f32 %v147, %v145
    %vm150 = vcmask 261120
    %151 = vst.msk [vmem:[#allocation5] sm:$0xff] %vm150, %v148
    %152 = vst.msk [vmem:[#allocation5 + $0x8] sm:$0xff] %vm150, %v149
    // Predicated region
    $region10: #{tpu_custom_call.1} parent=1 // pred_check
      _
    $region11: #{tpu_custom_call.1} parent=1 // pred_check_branch
      %154 = sbr.rel (0) target = $region13
    $region12: #{tpu_custom_call.1} parent=1 // pred_region
      %s156 = ssub.s32 256, 256
      %157 = vsyncadd [#allocation4], %s156
      %s158 = sshll.u32 [#allocation5], 4
      %s159 = int_to_ptr.vmem [resolvable:$true] %s158
      %164 = dma.vmem_to_hbm [thread:$0]  %s159, 256, %s1, [#allocation4], 128, 128, 8
    $region13: #{tpu_custom_call.1} parent=1 // pred_fallthru
      _
    // Predicated region
    $region14: #{tpu_custom_call.1} parent=1 // pred_check
      _
    $region15: #{tpu_custom_call.1} parent=1 // pred_check_branch
      %166 = sbr.rel (0) target = $region17
    $region16: #{tpu_custom_call.1} parent=1 // pred_region
      %167 = dma.done [#allocation4], 256
    $region17: #{tpu_custom_call.1} parent=1 // pred_fallthru
      _
    %168 = vsyncpa [#allocation3], 1
    %169 = vsyncpa [#allocation4], 1

</llo_original>
